<compile_context>
chip_gen: v5e
topology: v5e:2x2
jax: 0.10.0
libtpu: 0.0.40
codegen_flags: <defaults>
</compile_context>

<pallas_src>
import functools

import jax
import jax.numpy as jnp
from jax.experimental import pallas as pl
from jax.experimental.pallas import tpu as pltpu

BN_EPS = 1e-5
LANE = 128     # lane-dense padding target for the class / feature dims
MAX_TK = 8192  # upper bound on the K tile (multiple of 128)


def _round_up(v, m):
    return (v + m - 1) // m * m


def _vmem_capacity_bytes():
    """Physical VMEM bytes for the current TPU generation (safe fallback)."""
    try:
        info = pltpu.get_tpu_info()
        cap = int(getattr(info, "vmem_capacity_bytes", 0))
        if cap > 0:
            return cap
    except Exception:
        pass
    return 64 * 1024 * 1024   # conservative (v7x-sized) fallback


def _classifier_kernel(x_ref, w1_ref, g_ref, beta_ref, w2_ref, b2_ref, o_ref,
                       *, inv_batch):
    """Linear1 (K-tiled MXU accumulate into o_ref) -> BN(train) -> ReLU -> Linear2.

    Grid axis 0 iterates over the padded n_inputs (K) dimension.  The output
    block index is constant over that axis, so o_ref stays resident in VMEM
    and doubles as the f32 accumulator.  BatchNorm statistics divide by the
    true batch size (padded batch rows are all-zero, so they contribute
    nothing to sum(h) or sum(h*h)).  Linear1's bias is intentionally absent:
    training-mode BN subtracts the per-column batch mean, which cancels it.
    """
    k = pl.program_id(0)

    @pl.when(k == 0)
    def _():
        o_ref[...] = jnp.zeros_like(o_ref)

    # Linear 1 partial product on the MXU: (Bp, tk) @ (tk, Cp), f32 accumulate.
    o_ref[...] += jnp.dot(x_ref[...], w1_ref[...],
                          preferred_element_type=jnp.float32)

    @pl.when(k == pl.num_programs(0) - 1)
    def _():
        h = o_ref[...]                                        # (Bp, Cp) f32

        # BatchNorm1d, training mode, padded-row aware:
        #   mean = sum(h) / B_true ;  var = E[h^2] - mean^2  (biased)
        mean = jnp.sum(h, axis=0, keepdims=True) * inv_batch
        ex2 = jnp.sum(h * h, axis=0, keepdims=True) * inv_batch
        var = jnp.maximum(ex2 - mean * mean, 0.0)
        # gamma fused into the rsqrt scale; rsqrt runs on the EUP slot.
        scale = g_ref[...] * jax.lax.rsqrt(var + BN_EPS)
        h = (h - mean) * scale + beta_ref[...]

        # ReLU (f32, VPU).
        h = jnp.maximum(h, 0.0)

        # Linear 2 on the MXU: (Bp, Cp) @ (Cp, Cp) + (1, Cp).
        out = jnp.dot(h.astype(w2_ref.dtype), w2_ref[...],
                      preferred_element_type=jnp.float32)
        o_ref[...] = out + b2_ref[...]


def prepare_params(params, *, batch_size, use_bf16_matmul=True):
    """One-time padding / casting of the weights to lane-dense MXU layout.

    Call once at init / load time; the returned bundle is reused by every
    simplenet_forward call so the dominant w1 operand is never re-padded or
    re-cast on the forward path.
    """
    w1, b1, gamma, beta, w2, b2 = params
    del b1  # algebraically cancelled by the BN batch-mean subtraction

    K, C = w1.shape
    mxu_dtype = jnp.bfloat16 if use_bf16_matmul else jnp.float32
    itemsize = jnp.dtype(mxu_dtype).itemsize
    sub = 16 if use_bf16_matmul else 8

    Bp = _round_up(max(int(batch_size), 1), sub)
    Cp = _round_up(max(C, LANE), LANE)

    # ---- Generation-aware VMEM budget -> K tile and vmem limit -------------
    vmem_phys = _vmem_capacity_bytes()
    vmem_target = int(vmem_phys * 0.7)        # headroom for Mosaic scratch
    resident = (2 * Bp * Cp * 4               # output block (resident acc)
                + 2 * Cp * Cp * itemsize      # w2 (default double-buffered)
                + 3 * 2 * Cp * 4)             # gamma / beta / b2
    per_tk = 2 * (Bp + Cp) * itemsize         # double-buffered x & w1 tiles
    tile_budget = max(vmem_target - resident - (2 << 20), per_tk * LANE)
    tk = min(tile_budget // per_tk, MAX_TK, _round_up(max(K, 1), LANE))
    tk = max((tk // LANE) * LANE, LANE)
    Kp = _round_up(max(K, tk), tk)

    needed = resident + tk * per_tk + (1 << 20)
    vmem_limit = int(min(vmem_target, max(2 * needed, 4 * 1024 * 1024)))

    # ---- Zero-pad to lane-dense / tile-aligned shapes (done exactly once) --
    # Padded Linear1 columns give h == 0; with gamma_pad = 1, beta_pad = 0 BN
    # maps them to 0, ReLU keeps 0, and padded rows/cols of w2 / b2 are 0, so
    # padded lanes never leak into real outputs (sliced off after the call).
    w1p = jnp.zeros((Kp, Cp), mxu_dtype).at[:K, :C].set(w1.astype(mxu_dtype))
    gp = jnp.ones((1, Cp), jnp.float32).at[:, :C].set(gamma.reshape(1, C))
    bp = jnp.zeros((1, Cp), jnp.float32).at[:, :C].set(beta.reshape(1, C))
    w2p = jnp.zeros((Cp, Cp), mxu_dtype).at[:C, :C].set(w2.astype(mxu_dtype))
    b2p = jnp.zeros((1, Cp), jnp.float32).at[:, :C].set(b2.reshape(1, C))

    meta = dict(K=K, C=C, Kp=Kp, Cp=Cp, Bp=Bp, tk=tk, num_k=Kp // tk,
                mxu_dtype=mxu_dtype, itemsize=itemsize,
                vmem_limit=vmem_limit)
    return (w1p, gp, bp, w2p, b2p), meta


def simplenet_forward(x, prepared):
    """SimpleNet.forward classifier path. Returns (output, zeros(1))."""
    (w1p, gp, bp, w2p, b2p), meta = prepared
    B, K = x.shape
    assert K == meta["K"], "prepare_params was built for a different n_inputs"
    assert B <= meta["Bp"], "prepare_params was built for a smaller batch"

    Bp, Kp, Cp = meta["Bp"], meta["Kp"], meta["Cp"]
    tk, num_k = meta["tk"], meta["num_k"]
    mxu_dtype, itemsize = meta["mxu_dtype"], meta["itemsize"]

    # Only the (small) activation is padded / cast per call.
    if (B, K) == (Bp, Kp) and x.dtype == mxu_dtype:
        xp = x
    else:
        xp = jnp.zeros((Bp, Kp), mxu_dtype).at[:B, :K].set(x.astype(mxu_dtype))

    cost = pl.CostEstimate(
        flops=2 * Bp * (Kp * Cp + Cp * Cp),
        transcendentals=Cp,
        bytes_accessed=(Bp * Kp * itemsize + Kp * Cp * itemsize
                        + Cp * Cp * itemsize + Bp * Cp * 4),
    )

    vmem = pltpu.MemorySpace.VMEM
    kernel = functools.partial(_classifier_kernel, inv_batch=1.0 / float(B))
    out_p = pl.pallas_call(
        kernel,
        out_shape=jax.ShapeDtypeStruct((Bp, Cp), jnp.float32),
        grid_spec=pltpu.PrefetchScalarGridSpec(
            num_scalar_prefetch=0,
            grid=(num_k,),
            in_specs=[
                pl.BlockSpec((Bp, tk), lambda k: (0, k), memory_space=vmem),
                pl.BlockSpec((tk, Cp), lambda k: (k, 0), memory_space=vmem),
                pl.BlockSpec((1, Cp), lambda k: (0, 0), memory_space=vmem),
                pl.BlockSpec((1, Cp), lambda k: (0, 0), memory_space=vmem),
                pl.BlockSpec((Cp, Cp), lambda k: (0, 0), memory_space=vmem),
                pl.BlockSpec((1, Cp), lambda k: (0, 0), memory_space=vmem),
            ],
            out_specs=pl.BlockSpec((Bp, Cp), lambda k: (0, 0),
                                   memory_space=vmem),
        ),
        compiler_params=pltpu.CompilerParams(
            dimension_semantics=("arbitrary",),   # K is a reduction axis
            vmem_limit_bytes=meta["vmem_limit"],
        ),
        cost_estimate=cost,
    )(xp, w1p, gp, bp, w2p, b2p)

    out = out_p[:B, :meta["C"]]
    return out, jnp.zeros((1,), dtype=out.dtype)


def init_params(key, n_inputs, n_classes):
    """Deterministic parameter init (shapes mirror the PyTorch module).

    Linear weights are stored pre-transposed as (in, out); biases as (1, out).
    """
    k1, k2, k3, k4 = jax.random.split(key, 4)
    bound1 = 1.0 / jnp.sqrt(jnp.float32(n_inputs))
    w1 = jax.random.uniform(k1, (n_inputs, n_classes), jnp.float32,
                            -bound1, bound1)
    b1 = jax.random.uniform(k2, (1, n_classes), jnp.float32, -bound1, bound1)
    gamma = jnp.ones((1, n_classes), jnp.float32)
    beta = jnp.zeros((1, n_classes), jnp.float32)
    bound2 = 1.0 / jnp.sqrt(jnp.float32(n_classes))
    w2 = jax.random.uniform(k3, (n_classes, n_classes), jnp.float32,
                            -bound2, bound2)
    b2 = jax.random.uniform(k4, (1, n_classes), jnp.float32, -bound2, bound2)
    return (w1, b1, gamma, beta, w2, b2)


def _reference_forward(x, params):
    """Pure-JAX f32 reference of the PyTorch classifier (train-mode BN)."""
    w1, b1, gamma, beta, w2, b2 = params
    h = x @ w1 + b1                       # b1 included here: BN cancels it
    mean = jnp.mean(h, axis=0, keepdims=True)
    var = jnp.mean((h - mean) ** 2, axis=0, keepdims=True)
    h = (h - mean) * jax.lax.rsqrt(var + BN_EPS) * gamma + beta
    h = jnp.maximum(h, 0.0)
    return h @ w2 + b2


if __name__ == "__main__":
    # Small shapes consistent with the module: x is (batch, n_inputs).
    batch, n_inputs, n_classes = 8, 4, 2

    key = jax.random.PRNGKey(0)
    k_x, k_p = jax.random.split(key)
    x = jax.random.normal(k_x, (batch, n_inputs), dtype=jnp.float32)
    params = init_params(k_p, n_inputs, n_classes)

    prepared = prepare_params(params, batch_size=batch)   # one-time cost
    out, aux = simplenet_forward(x, prepared)
    jax.block_until_ready(out)
    jax.block_until_ready(aux)

    assert out.shape == (batch, n_classes)
    assert aux.shape == (1,)
    assert bool(jnp.all(jnp.isfinite(out)))

    # Loose sanity check vs. an f32 reference (kernel uses bf16 MXU operands).
    ref = _reference_forward(x, params)
    assert bool(jnp.allclose(out, ref, atol=1e-1, rtol=1e-1))

    print("KERNEL_OK")
</pallas_src>

<mosaic_0001>
module attributes {stable_mosaic.version = 11 : i64} {
  func.func @_classifier_kernel(%arg0: i32, %arg1: memref<16x128xbf16, #tpu.memory_space<vmem>>, %arg2: memref<128x128xbf16, #tpu.memory_space<vmem>>, %arg3: memref<1x128xf32, #tpu.memory_space<vmem>>, %arg4: memref<1x128xf32, #tpu.memory_space<vmem>>, %arg5: memref<128x128xbf16, #tpu.memory_space<vmem>>, %arg6: memref<1x128xf32, #tpu.memory_space<vmem>>, %arg7: memref<16x128xf32, #tpu.memory_space<vmem>>) attributes {dimension_semantics = [#tpu.dimension_semantics<arbitrary>], iteration_bounds = array<i64: 1>, scalar_prefetch = 0 : i64, scratch_operands = 0 : i64, tpu.core_type = #tpu.core_type<tc>, window_params = [{transform_indices = @transform_0, window_bounds = array<i64: 16, 128>}, {transform_indices = @transform_1, window_bounds = array<i64: 128, 128>}, {pipeline_mode = #tpu.pipeline_mode<synchronous>, transform_indices = @transform_2, window_bounds = array<i64: 1, 128>}, {pipeline_mode = #tpu.pipeline_mode<synchronous>, transform_indices = @transform_3, window_bounds = array<i64: 1, 128>}, {pipeline_mode = #tpu.pipeline_mode<synchronous>, transform_indices = @transform_4, window_bounds = array<i64: 128, 128>}, {pipeline_mode = #tpu.pipeline_mode<synchronous>, transform_indices = @transform_5, window_bounds = array<i64: 1, 128>}, {pipeline_mode = #tpu.pipeline_mode<synchronous>, transform_indices = @transform_6, window_bounds = array<i64: 16, 128>}]} {
    %c0_i32 = arith.constant 0 : i32
    %0 = arith.cmpi eq, %arg0, %c0_i32 : i32
    %1 = arith.extui %0 : i1 to i32
    %c0_i32_0 = arith.constant 0 : i32
    %2 = arith.cmpi ne, %1, %c0_i32_0 : i32
    scf.if %2 {
      %cst_10 = arith.constant 0.000000e+00 : f32
      %12 = vector.broadcast %cst_10 : f32 to vector<16x128xf32>
      %c0_11 = arith.constant 0 : index
      %c0_12 = arith.constant 0 : index
      %13 = vector.load %arg7[%c0_11, %c0_12] : memref<16x128xf32, #tpu.memory_space<vmem>>, vector<16x128xf32>
      tpu.vector_store %arg7[%c0_11, %c0_12], %12 {strides = array<i32>} : memref<16x128xf32, #tpu.memory_space<vmem>>, vector<16x128xf32>,
    } else {
    }
    %c0 = arith.constant 0 : index
    %c0_1 = arith.constant 0 : index
    %3 = vector.load %arg7[%c0, %c0_1] : memref<16x128xf32, #tpu.memory_space<vmem>>, vector<16x128xf32>
    %c0_2 = arith.constant 0 : index
    %c0_3 = arith.constant 0 : index
    %4 = vector.load %arg1[%c0_2, %c0_3] : memref<16x128xbf16, #tpu.memory_space<vmem>>, vector<16x128xbf16>
    %c0_4 = arith.constant 0 : index
    %c0_5 = arith.constant 0 : index
    %5 = vector.load %arg2[%c0_4, %c0_5] : memref<128x128xbf16, #tpu.memory_space<vmem>>, vector<128x128xbf16>
    %cst = arith.constant dense<0.000000e+00> : vector<16x128xf32>
    %6 = tpu.matmul %4, %5, %cst {dimension_numbers = #tpu.dot_dimension_numbers<[1], [0], [0], [1], [0, 0, 1, 1], [], []>} : vector<16x128xbf16>, vector<128x128xbf16>, vector<16x128xf32> -> vector<16x128xf32>
    %7 = arith.addf %3, %6 : vector<16x128xf32>
    %c0_6 = arith.constant 0 : index
    %c0_7 = arith.constant 0 : index
    %8 = vector.load %arg7[%c0_6, %c0_7] : memref<16x128xf32, #tpu.memory_space<vmem>>, vector<16x128xf32>
    tpu.vector_store %arg7[%c0_6, %c0_7], %7 {strides = array<i32>} : memref<16x128xf32, #tpu.memory_space<vmem>>, vector<16x128xf32>,
    %c0_i32_8 = arith.constant 0 : i32
    %9 = arith.cmpi eq, %arg0, %c0_i32_8 : i32
    %10 = arith.extui %9 : i1 to i32
    %c0_i32_9 = arith.constant 0 : i32
    %11 = arith.cmpi ne, %10, %c0_i32_9 : i32
    scf.if %11 {
      %c0_10 = arith.constant 0 : index
      %c0_11 = arith.constant 0 : index
      %12 = vector.load %arg7[%c0_10, %c0_11] : memref<16x128xf32, #tpu.memory_space<vmem>>, vector<16x128xf32>
      %cst_12 = arith.constant dense<0.000000e+00> : vector<128xf32>
      %13 = vector.multi_reduction <add>, %12, %cst_12 [0] : vector<16x128xf32> to vector<128xf32>
      %14 = vector.shape_cast %13 : vector<128xf32> to vector<1x128xf32>
      %cst_13 = arith.constant 1.250000e-01 : f32
      %15 = vector.broadcast %cst_13 : f32 to vector<1x128xf32>
      %16 = arith.mulf %14, %15 : vector<1x128xf32>
      %17 = arith.mulf %12, %12 : vector<16x128xf32>
      %cst_14 = arith.constant dense<0.000000e+00> : vector<128xf32>
      %18 = vector.multi_reduction <add>, %17, %cst_14 [0] : vector<16x128xf32> to vector<128xf32>
      %19 = vector.shape_cast %18 : vector<128xf32> to vector<1x128xf32>
      %cst_15 = arith.constant 1.250000e-01 : f32
      %20 = vector.broadcast %cst_15 : f32 to vector<1x128xf32>
      %21 = arith.mulf %19, %20 : vector<1x128xf32>
      %22 = arith.mulf %16, %16 : vector<1x128xf32>
      %23 = arith.subf %21, %22 : vector<1x128xf32>
      %cst_16 = arith.constant 0.000000e+00 : f32
      %24 = vector.broadcast %cst_16 : f32 to vector<1x128xf32>
      %25 = arith.maximumf %23, %24 : vector<1x128xf32>
      %c0_17 = arith.constant 0 : index
      %c0_18 = arith.constant 0 : index
      %26 = vector.load %arg3[%c0_17, %c0_18] : memref<1x128xf32, #tpu.memory_space<vmem>>, vector<1x128xf32>
      %cst_19 = arith.constant 9.99999974E-6 : f32
      %27 = vector.broadcast %cst_19 : f32 to vector<1x128xf32>
      %28 = arith.addf %25, %27 : vector<1x128xf32>
      %29 = math.rsqrt %28 : vector<1x128xf32>
      %30 = arith.mulf %26, %29 : vector<1x128xf32>
      %31 = vector.broadcast %16 : vector<1x128xf32> to vector<16x128xf32>
      %32 = arith.subf %12, %31 : vector<16x128xf32>
      %33 = vector.broadcast %30 : vector<1x128xf32> to vector<16x128xf32>
      %34 = arith.mulf %32, %33 : vector<16x128xf32>
      %c0_20 = arith.constant 0 : index
      %c0_21 = arith.constant 0 : index
      %35 = vector.load %arg4[%c0_20, %c0_21] : memref<1x128xf32, #tpu.memory_space<vmem>>, vector<1x128xf32>
      %36 = vector.broadcast %35 : vector<1x128xf32> to vector<16x128xf32>
      %37 = arith.addf %34, %36 : vector<16x128xf32>
      %cst_22 = arith.constant 0.000000e+00 : f32
      %38 = vector.broadcast %cst_22 : f32 to vector<16x128xf32>
      %39 = arith.maximumf %37, %38 : vector<16x128xf32>
      %40 = arith.truncf %39 : vector<16x128xf32> to vector<16x128xbf16>
      %c0_23 = arith.constant 0 : index
      %c0_24 = arith.constant 0 : index
      %41 = vector.load %arg5[%c0_23, %c0_24] : memref<128x128xbf16, #tpu.memory_space<vmem>>, vector<128x128xbf16>
      %cst_25 = arith.constant dense<0.000000e+00> : vector<16x128xf32>
      %42 = tpu.matmul %40, %41, %cst_25 {dimension_numbers = #tpu.dot_dimension_numbers<[1], [0], [0], [1], [0, 0, 1, 1], [], []>} : vector<16x128xbf16>, vector<128x128xbf16>, vector<16x128xf32> -> vector<16x128xf32>
      %c0_26 = arith.constant 0 : index
      %c0_27 = arith.constant 0 : index
      %43 = vector.load %arg6[%c0_26, %c0_27] : memref<1x128xf32, #tpu.memory_space<vmem>>, vector<1x128xf32>
      %44 = vector.broadcast %43 : vector<1x128xf32> to vector<16x128xf32>
      %45 = arith.addf %42, %44 : vector<16x128xf32>
      %c0_28 = arith.constant 0 : index
      %c0_29 = arith.constant 0 : index
      %46 = vector.load %arg7[%c0_28, %c0_29] : memref<16x128xf32, #tpu.memory_space<vmem>>, vector<16x128xf32>
      tpu.vector_store %arg7[%c0_28, %c0_29], %45 {strides = array<i32>} : memref<16x128xf32, #tpu.memory_space<vmem>>, vector<16x128xf32>,
    } else {
    }
    return
  }
  func.func @transform_0(%arg0: i32) -> (i32, i32) {
    %c0_i32 = arith.constant 0 : i32
    %c0_i32_0 = arith.constant 0 : i32
    return %c0_i32, %arg0 : i32, i32
  }
  func.func @transform_1(%arg0: i32) -> (i32, i32) {
    %c0_i32 = arith.constant 0 : i32
    %c0_i32_0 = arith.constant 0 : i32
    return %arg0, %c0_i32 : i32, i32
  }
  func.func @transform_2(%arg0: i32) -> (i32, i32) {
    %c0_i32 = arith.constant 0 : i32
    %c0_i32_0 = arith.constant 0 : i32
    %c0_i32_1 = arith.constant 0 : i32
    return %c0_i32, %c0_i32_0 : i32, i32
  }
  func.func @transform_3(%arg0: i32) -> (i32, i32) {
    %c0_i32 = arith.constant 0 : i32
    %c0_i32_0 = arith.constant 0 : i32
    %c0_i32_1 = arith.constant 0 : i32
    return %c0_i32, %c0_i32_0 : i32, i32
  }
  func.func @transform_4(%arg0: i32) -> (i32, i32) {
    %c0_i32 = arith.constant 0 : i32
    %c0_i32_0 = arith.constant 0 : i32
    %c0_i32_1 = arith.constant 0 : i32
    return %c0_i32, %c0_i32_0 : i32, i32
  }
  func.func @transform_5(%arg0: i32) -> (i32, i32) {
    %c0_i32 = arith.constant 0 : i32
    %c0_i32_0 = arith.constant 0 : i32
    %c0_i32_1 = arith.constant 0 : i32
    return %c0_i32, %c0_i32_0 : i32, i32
  }
  func.func @transform_6(%arg0: i32) -> (i32, i32) {
    %c0_i32 = arith.constant 0 : i32
    %c0_i32_0 = arith.constant 0 : i32
    %c0_i32_1 = arith.constant 0 : i32
    return %c0_i32, %c0_i32_0 : i32, i32
  }
}

</mosaic_0001>

<llo_original>
// kernel: tpu_custom_call.1
$region0: #{tpu_custom_call.1}
  #allocation0 [shape = 'u32[]', space=smem, size = 0x4, offset = 0x4, fixed_abs, tag = 'smem constant byte address 0x4 - core index']
  #allocation1 [shape = 'u32[72,128]{1,0:T(1,128)}', space=vmem, size = 0x9000, scoped, tag = 'internal scratch']
  %s0 = inlined_call_operand.hbm [shape: bf16[16,128], index: 0, kind: input, shape index: {}]
  %s1 = inlined_call_operand.hbm [shape: bf16[128,128], index: 1, kind: input, shape index: {}]
  %s2 = inlined_call_operand.vmem [shape: f32[1,128], index: 2, kind: input, shape index: {}]
  %s3 = inlined_call_operand.vmem [shape: f32[1,128], index: 3, kind: input, shape index: {}]
  %s4 = inlined_call_operand.hbm [shape: bf16[128,128], index: 4, kind: input, shape index: {}]
  %s5 = inlined_call_operand.vmem [shape: f32[1,128], index: 5, kind: input, shape index: {}]
  %s6 = inlined_call_operand.hbm [shape: f32[16,128], index: 6, kind: output, shape index: {}]
  %s7 = sld [smem:[#allocation0]]
  $region54: #{tpu_custom_call.1} parent=0
    _
  %s9 = ssub.s32 1, %s7
  %s10 = scalar_select 0, %s9, %s7
  $region1: #{tpu_custom_call.1} parent=0
    #allocation2 [shape = 'u8[4096]{0}', space=vmem, size = 0x1000, scoped, tag = 'input window, operand 0, single buffered']
    #allocation3 [shape = 's32[1]{0}', space=sflag, size = 0x4, scoped, tag = 'scoped memory for tpu_custom_call.1']
    #allocation4 [shape = 's32[1]{0}', space=sflag, size = 0x4, scoped, tag = 'scoped memory for tpu_custom_call.1']
    #allocation5 [shape = 'u8[32768]{0}', space=vmem, size = 0x8000, scoped, tag = 'input window, operand 1, single buffered']
    #allocation6 [shape = 's32[1]{0}', space=sflag, size = 0x4, scoped, tag = 'scoped memory for tpu_custom_call.1']
    #allocation7 [shape = 'u8[32768]{0}', space=vmem, size = 0x8000, scoped, tag = 'input window, operand 4, single buffered']
    #allocation8 [shape = 'u8[8192]{0}', space=vmem, size = 0x2000, scoped, tag = 'output window, operand 0, single buffered']
    %11 = vsyncpa [#allocation3], 0
    %12 = vsyncpa [#allocation6], 0
    %13 = vsyncpa [#allocation4], 0
    // Predicated region
    $region2: #{tpu_custom_call.1} parent=1 // pred_check
      _
    $region3: #{tpu_custom_call.1} parent=1 // pred_check_branch
      %15 = sbr.rel (0) target = $region5
    $region4: #{tpu_custom_call.1} parent=1 // pred_region
      %17 = vsyncadd [#allocation3], 0
      %s18 = sshll.u32 %s0, 4
      %s19 = int_to_ptr.hbm [resolvable:$true] %s18
      %s20 = sshll.u32 [#allocation2], 4
      %s21 = int_to_ptr.vmem [resolvable:$true] %s20
      %26 = dma.hbm_to_vmem [thread:$0]  %s19, 128, %s21, [#allocation3], 64, 64, 4
    $region5: #{tpu_custom_call.1} parent=1 // pred_fallthru
      _
    // Predicated region
    $region6: #{tpu_custom_call.1} parent=1 // pred_check
      _
    $region7: #{tpu_custom_call.1} parent=1 // pred_check_branch
      %28 = sbr.rel (0) target = $region9
    $region8: #{tpu_custom_call.1} parent=1 // pred_region
      %30 = vsyncadd [#allocation6], 0
      %s31 = sshll.u32 %s1, 4
      %s32 = int_to_ptr.hbm [resolvable:$true] %s31
      %s33 = sshll.u32 [#allocation5], 4
      %s34 = int_to_ptr.vmem [resolvable:$true] %s33
      %39 = dma.hbm_to_vmem [thread:$0]  %s32, 1024, %s34, [#allocation6], 64, 64, 4
    $region9: #{tpu_custom_call.1} parent=1 // pred_fallthru
      _
    // Predicated region
    $region10: #{tpu_custom_call.1} parent=1 // pred_check
      _
    $region11: #{tpu_custom_call.1} parent=1 // pred_check_branch
      %41 = sbr.rel (0) target = $region13
    $region12: #{tpu_custom_call.1} parent=1 // pred_region
      _
    $region13: #{tpu_custom_call.1} parent=1 // pred_fallthru
      _
    // Predicated region
    $region14: #{tpu_custom_call.1} parent=1 // pred_check
      _
    $region15: #{tpu_custom_call.1} parent=1 // pred_check_branch
      %43 = sbr.rel (0) target = $region17
    $region16: #{tpu_custom_call.1} parent=1 // pred_region
      _
    $region17: #{tpu_custom_call.1} parent=1 // pred_fallthru
      _
    // Predicated region
    $region18: #{tpu_custom_call.1} parent=1 // pred_check
      _
    $region19: #{tpu_custom_call.1} parent=1 // pred_check_branch
      %45 = sbr.rel (0) target = $region21
    $region20: #{tpu_custom_call.1} parent=1 // pred_region
      %47 = vsyncadd [#allocation6], 0
      %s48 = sshll.u32 %s4, 4
      %s49 = int_to_ptr.hbm [resolvable:$true] %s48
      %s50 = sshll.u32 [#allocation7], 4
      %s51 = int_to_ptr.vmem [resolvable:$true] %s50
      %56 = dma.hbm_to_vmem [thread:$0]  %s49, 1024, %s51, [#allocation6], 64, 64, 4
    $region21: #{tpu_custom_call.1} parent=1 // pred_fallthru
      _
    // Predicated region
    $region22: #{tpu_custom_call.1} parent=1 // pred_check
      _
    $region23: #{tpu_custom_call.1} parent=1 // pred_check_branch
      %58 = sbr.rel (0) target = $region25
    $region24: #{tpu_custom_call.1} parent=1 // pred_region
      _
    $region25: #{tpu_custom_call.1} parent=1 // pred_fallthru
      _
    // Predicated region
    $region26: #{tpu_custom_call.1} parent=1 // pred_check
      _
    $region27: #{tpu_custom_call.1} parent=1 // pred_check_branch
      %60 = sbr.rel (0) target = $region29
    $region28: #{tpu_custom_call.1} parent=1 // pred_region
      %62 = dma.done [#allocation3], 128
    $region29: #{tpu_custom_call.1} parent=1 // pred_fallthru
      _
    // Predicated region
    $region30: #{tpu_custom_call.1} parent=1 // pred_check
      _
    $region31: #{tpu_custom_call.1} parent=1 // pred_check_branch
      %64 = sbr.rel (0) target = $region33
    $region32: #{tpu_custom_call.1} parent=1 // pred_region
      %66 = dma.done [#allocation6], 1024
    $region33: #{tpu_custom_call.1} parent=1 // pred_fallthru
      _
    // Predicated region
    $region34: #{tpu_custom_call.1} parent=1 // pred_check
      _
    $region35: #{tpu_custom_call.1} parent=1 // pred_check_branch
      %68 = sbr.rel (0) target = $region37
    $region36: #{tpu_custom_call.1} parent=1 // pred_region
      %70 = dma.done [#allocation6], 1024
    $region37: #{tpu_custom_call.1} parent=1 // pred_fallthru
      _
    %p71 = scmp.eq.s32.totalorder 0, 0
    // Predicated region
    $region38: #{tpu_custom_call.1} parent=1 // pred_check
      %p72 = pneg %p71
    $region39: #{tpu_custom_call.1} parent=1 // pred_check_branch
      %74 = sbr.rel (%p72) target = $region41
    $region40: #{tpu_custom_call.1} parent=1 // pred_region
      %75 = vst [vmem:[#allocation8] sm:$0xff] 0.0
      %76 = vst [vmem:[#allocation8 + $0x8] sm:$0xff] 0.0
    $region41: #{tpu_custom_call.1} parent=1 // pred_fallthru
      _
    %v77 = vld [vmem:[#allocation8] sm:$0xff]
    %v78 = vld [vmem:[#allocation8 + $0x8] sm:$0xff]
    %v79 = vld [vmem:[#allocation2] sm:$0xf]
    %v80 = vld [vmem:[#allocation2 + $0x4] sm:$0xf]
    %v81 = vld [vmem:[#allocation5] sm:$0xf]
    %v82 = vld [vmem:[#allocation5 + $0x4] sm:$0xf]
    %v83 = vld [vmem:[#allocation5 + $0x8] sm:$0xf]
    %v84 = vld [vmem:[#allocation5 + $0xc] sm:$0xf]
    %v85 = vld [vmem:[#allocation5 + $0x10] sm:$0xf]
    %v86 = vld [vmem:[#allocation5 + $0x14] sm:$0xf]
    %v87 = vld [vmem:[#allocation5 + $0x18] sm:$0xf]
    %v88 = vld [vmem:[#allocation5 + $0x1c] sm:$0xf]
    %v89 = vld [vmem:[#allocation5 + $0x20] sm:$0xf]
    %v90 = vld [vmem:[#allocation5 + $0x24] sm:$0xf]
    %v91 = vld [vmem:[#allocation5 + $0x28] sm:$0xf]
    %v92 = vld [vmem:[#allocation5 + $0x2c] sm:$0xf]
    %v93 = vld [vmem:[#allocation5 + $0x30] sm:$0xf]
    %v94 = vld [vmem:[#allocation5 + $0x34] sm:$0xf]
    %v95 = vld [vmem:[#allocation5 + $0x38] sm:$0xf]
    %v96 = vld [vmem:[#allocation5 + $0x3c] sm:$0xf]
    %v99 = vunpack.c.l.b16 %v79
    %v100 = vunpack.c.l.b16 %v80
    %v101 = vpack.c.b16 %v100, %v99
    %v119 = vunpack.c.l.b16 %v81
    %v120 = vunpack.c.l.b16 %v82
    %v121 = vunpack.c.l.b16 %v83
    %v122 = vunpack.c.l.b16 %v84
    %v123 = vunpack.c.l.b16 %v85
    %v124 = vunpack.c.l.b16 %v86
    %v125 = vunpack.c.l.b16 %v87
    %v126 = vunpack.c.l.b16 %v88
    %v127 = vunpack.c.l.b16 %v89
    %v128 = vunpack.c.l.b16 %v90
    %v129 = vunpack.c.l.b16 %v91
    %v130 = vunpack.c.l.b16 %v92
    %v131 = vunpack.c.l.b16 %v93
    %v132 = vunpack.c.l.b16 %v94
    %v133 = vunpack.c.l.b16 %v95
    %v134 = vunpack.c.l.b16 %v96
    %v135 = vpack.c.b16 %v120, %v119
    %v136 = vpack.c.b16 %v122, %v121
    %v137 = vpack.c.b16 %v124, %v123
    %v138 = vpack.c.b16 %v126, %v125
    %v139 = vpack.c.b16 %v128, %v127
    %v140 = vpack.c.b16 %v130, %v129
    %v141 = vpack.c.b16 %v132, %v131
    %v142 = vpack.c.b16 %v134, %v133
    %151 = vmatpush.bf16.msra.mxu0 %v142
    %152 = vmatpush.bf16.msra.mxu0 %v141
    %153 = vmatpush.bf16.msra.mxu0 %v140
    %154 = vmatpush.bf16.msra.mxu0 %v139
    %155 = vmatpush.bf16.msra.mxu0 %v138
    %156 = vmatpush.bf16.msra.mxu0 %v137
    %157 = vmatpush.bf16.msra.mxu0 %v136
    %158 = vmatpush.bf16.msra.mxu0 %v135
    %159 = vmatmul.bf16.gmra.mxu0 %v101
    %v160 = vpop.f32.mrf.mxu0
    %v161 = vadd.f32 0.0, %v160
    %v162 = vpop.f32.mrf.mxu0
    %v163 = vadd.f32 0.0, %v162
    %164 = vdwg.mxu0
    %v165 = vadd.f32 %v77, %v161
    %v166 = vadd.f32 %v78, %v163
    %167 = vst [vmem:[#allocation8] sm:$0xff] %v165
    %168 = vst [vmem:[#allocation8 + $0x8] sm:$0xff] %v166
    // Predicated region
    $region42: #{tpu_custom_call.1} parent=1 // pred_check
      %p169 = pneg %p71
    $region43: #{tpu_custom_call.1} parent=1 // pred_check_branch
      %171 = sbr.rel (%p169) target = $region45
    $region44: #{tpu_custom_call.1} parent=1 // pred_region
      %v172 = vld [vmem:[#allocation8] sm:$0xff]
      %v173 = vld [vmem:[#allocation8 + $0x8] sm:$0xff]
      %v174 = vadd.f32 %v172, %v173
      %v175 = vrot.slane %v174, 4
      %v176 = vadd.f32 %v174, %v175
      %v177 = vrot.slane %v176, 2
      %v178 = vadd.f32 %v176, %v177
      %v179 = vrot.slane %v178, 1
      %v180 = vadd.f32 %v178, %v179
      %v181 = vmul.f32 %v180, 0.125
      %v182 = vmul.f32 %v172, %v172
      %v183 = vmul.f32 %v173, %v173
      %v184 = vadd.f32 %v182, %v183
      %v185 = vrot.slane %v184, 4
      %v186 = vadd.f32 %v184, %v185
      %v187 = vrot.slane %v186, 2
      %v188 = vadd.f32 %v186, %v187
      %v189 = vrot.slane %v188, 1
      %v190 = vadd.f32 %v188, %v189
      %v191 = vmul.f32 %v190, 0.125
      %v192 = vmul.f32 %v181, %v181
      %v193 = vsub.f32 %v191, %v192
      %v194 = vmax.f32 %v193, 0.0
      %v195 = vld [vmem:[%s2] sm:$0x1]
      %v196 = vadd.f32 %v194, 1e-05
      %v197 = vrsqrt.pop %v196
      %v198 = vmul.f32 %v197, %v196
      %v199 = vmul.f32 %v198, %v197
      %v200 = vmul.f32 0.5, %v199
      %v201 = vsub.f32 1.5, %v200
      %v202 = vmul.f32 %v197, %v201
      %vm203 = vweird.f32 %v196
      %vm204 = vweird.f32 %v197
      %vm205 = vmor %vm203, %vm204
      %v206 = vsel %vm205, %v197, %v202
      %v207 = vmul.f32 %v195, %v206
      %v208 = vsub.f32 %v172, %v181
      %v209 = vsub.f32 %v173, %v181
      %v211 = vperm.slane %v207, 0
      %v213 = vmul.f32 %v208, %v211
      %v214 = vmul.f32 %v209, %v211
      %v215 = vld [vmem:[%s3] sm:$0x1]
      %v217 = vperm.slane %v215, 0
      %v219 = vadd.f32 %v213, %v217
      %v220 = vadd.f32 %v214, %v217
      %v221 = vmax.f32 %v219, 0.0
      %v222 = vmax.f32 %v220, 0.0
      %v223 = vpack.c.bf16 %v222, %v221
      %v224 = vld [vmem:[#allocation7] sm:$0xf]
      %v225 = vld [vmem:[#allocation7 + $0x4] sm:$0xf]
      %v226 = vld [vmem:[#allocation7 + $0x8] sm:$0xf]
      %v227 = vld [vmem:[#allocation7 + $0xc] sm:$0xf]
      %v228 = vld [vmem:[#allocation7 + $0x10] sm:$0xf]
      %v229 = vld [vmem:[#allocation7 + $0x14] sm:$0xf]
      %v230 = vld [vmem:[#allocation7 + $0x18] sm:$0xf]
      %v231 = vld [vmem:[#allocation7 + $0x1c] sm:$0xf]
      %v232 = vld [vmem:[#allocation7 + $0x20] sm:$0xf]
      %v233 = vld [vmem:[#allocation7 + $0x24] sm:$0xf]
      %v234 = vld [vmem:[#allocation7 + $0x28] sm:$0xf]
      %v235 = vld [vmem:[#allocation7 + $0x2c] sm:$0xf]
      %v236 = vld [vmem:[#allocation7 + $0x30] sm:$0xf]
      %v237 = vld [vmem:[#allocation7 + $0x34] sm:$0xf]
      %v238 = vld [vmem:[#allocation7 + $0x38] sm:$0xf]
      %v239 = vld [vmem:[#allocation7 + $0x3c] sm:$0xf]
      %v240 = vld [vmem:[%s5] sm:$0x1]
      %v242 = vperm.slane %v240, 0
      %v260 = vunpack.c.l.b16 %v224
      %v261 = vunpack.c.l.b16 %v225
      %v262 = vunpack.c.l.b16 %v226
      %v263 = vunpack.c.l.b16 %v227
      %v264 = vunpack.c.l.b16 %v228
      %v265 = vunpack.c.l.b16 %v229
      %v266 = vunpack.c.l.b16 %v230
      %v267 = vunpack.c.l.b16 %v231
      %v268 = vunpack.c.l.b16 %v232
      %v269 = vunpack.c.l.b16 %v233
      %v270 = vunpack.c.l.b16 %v234
      %v271 = vunpack.c.l.b16 %v235
      %v272 = vunpack.c.l.b16 %v236
      %v273 = vunpack.c.l.b16 %v237
      %v274 = vunpack.c.l.b16 %v238
      %v275 = vunpack.c.l.b16 %v239
      %v276 = vpack.c.b16 %v261, %v260
      %v277 = vpack.c.b16 %v263, %v262
      %v278 = vpack.c.b16 %v265, %v264
      %v279 = vpack.c.b16 %v267, %v266
      %v280 = vpack.c.b16 %v269, %v268
      %v281 = vpack.c.b16 %v271, %v270
      %v282 = vpack.c.b16 %v273, %v272
      %v283 = vpack.c.b16 %v275, %v274
      %292 = vmatpush.bf16.msra.mxu0 %v283
      %293 = vmatpush.bf16.msra.mxu0 %v282
      %294 = vmatpush.bf16.msra.mxu0 %v281
      %295 = vmatpush.bf16.msra.mxu0 %v280
      %296 = vmatpush.bf16.msra.mxu0 %v279
      %297 = vmatpush.bf16.msra.mxu0 %v278
      %298 = vmatpush.bf16.msra.mxu0 %v277
      %299 = vmatpush.bf16.msra.mxu0 %v276
      %300 = vmatmul.bf16.gmra.mxu0 %v223
      %v301 = vpop.f32.mrf.mxu0
      %v302 = vadd.f32 %v242, %v301
      %v303 = vpop.f32.mrf.mxu0
      %v304 = vadd.f32 %v242, %v303
      %305 = vdwg.mxu0
      %306 = vst [vmem:[#allocation8] sm:$0xff] %v302
      %307 = vst [vmem:[#allocation8 + $0x8] sm:$0xff] %v304
    $region45: #{tpu_custom_call.1} parent=1 // pred_fallthru
      _
    // Predicated region
    $region46: #{tpu_custom_call.1} parent=1 // pred_check
      _
    $region47: #{tpu_custom_call.1} parent=1 // pred_check_branch
      %309 = sbr.rel (0) target = $region49
    $region48: #{tpu_custom_call.1} parent=1 // pred_region
      %311 = vsyncadd [#allocation4], 0
      %s312 = sshll.u32 [#allocation8], 4
      %s313 = int_to_ptr.vmem [resolvable:$true] %s312
      %s314 = sshll.u32 %s6, 4
      %s315 = int_to_ptr.hbm [resolvable:$true] %s314
      %320 = dma.vmem_to_hbm [thread:$0]  %s313, 256, %s315, [#allocation4], 128, 128, 8
    $region49: #{tpu_custom_call.1} parent=1 // pred_fallthru
      _
    // Predicated region
    $region50: #{tpu_custom_call.1} parent=1 // pred_check
      _
    $region51: #{tpu_custom_call.1} parent=1 // pred_check_branch
      %322 = sbr.rel (0) target = $region53
    $region52: #{tpu_custom_call.1} parent=1 // pred_region
      %324 = dma.done [#allocation4], 256
    $region53: #{tpu_custom_call.1} parent=1 // pred_fallthru
      _
    %325 = vsyncpa [#allocation3], 1
    %326 = vsyncpa [#allocation6], 1
    %327 = vsyncpa [#allocation4], 1

</llo_original>
